<compile_context>
chip_gen: v5e
topology: v5e:2x2
jax: 0.10.0
libtpu: 0.0.40
codegen_flags: <defaults>
</compile_context>

<pallas_src>
import functools

import jax
import jax.numpy as jnp
from jax.experimental import pallas as pl
from jax.experimental.pallas import tpu as pltpu


def head_kernel(x_ref, w_ref, cams_ref, *, scale):
    """One fused MXU matmul per (batch, hw-tile) grid step.

    x_ref   : (Cin, t_hw)  one image's NCHW activation slab (channels = sublanes)
    w_ref   : (N,   Cin)   fused head weight (linear_w @ conv3_w), VMEM-resident
    cams_ref: (N,   t_hw)  hi-res CAM tile, already scaled by 1/(W*W)
    """
    cams_ref[...] = (
        jnp.dot(w_ref[...], x_ref[...], preferred_element_type=jnp.float32) * scale
    ).astype(cams_ref.dtype)


def fuse_head_weights(conv3_w, linear_w, *, dtype=jnp.bfloat16):
    """Fold layer4[-1].conv3 (1x1) and the classifier into one [N, Cin] matrix.

    `feature_rect` is never returned on the training path, so the fold is
    semantics-preserving up to accumulation order. Call this ONCE per weight
    update (it is hoisted out of the per-step forward on purpose).
    """
    cout, cin = conv3_w.shape[0], conv3_w.shape[1]
    w = linear_w.astype(jnp.float32) @ conv3_w.reshape(cout, cin).astype(jnp.float32)
    return w.astype(dtype)  # [N_CLASSES, Cin]


def model_forward(x_nchw, w_fused_t, *, t_hw_target=512):
    """Training-mode forward: returns (logits, bp_free_hi_res_cams).

    x_nchw   : [B, Cin, H, W]   activation entering layer4[-1].conv3 (NCHW;
                                keep it bf16 at the producer for ~2x HBM bandwidth)
    w_fused_t: [N_CLASSES, Cin] output of fuse_head_weights()
    """
    B, Cin, H, W = x_nchw.shape
    N = w_fused_t.shape[0]
    HW = H * W

    # Stream the (tiny) fused weight in the activation's dtype.
    w_in = w_fused_t.astype(x_nchw.dtype)

    # NCHW consumed directly: [B, Cin, H, W] -> [B, Cin, H*W] is a free reshape
    # (no transpose, no second HBM copy of the activation).
    x_flat = x_nchw.reshape(B, Cin, HW)

    if HW <= t_hw_target:
        t_hw = HW          # whole image in one lane tile; block == full dim is legal
        hw_pad = HW
    else:
        t_hw = t_hw_target  # multiple of 128 -> unmasked, lane-dense stores
        hw_pad = pl.cdiv(HW, t_hw) * t_hw
        if hw_pad != HW:
            # TODO(synk): this pad re-copies the activation; emit HW % t_hw == 0 upstream.
            x_flat = jnp.pad(x_flat, ((0, 0), (0, 0), (0, hw_pad - HW)))

    grid = (B, hw_pad // t_hw)  # B >= 2 keeps both v7x TensorCores busy

    cams_flat = pl.pallas_call(
        functools.partial(head_kernel, scale=1.0 / float(W * W)),
        out_shape=jax.ShapeDtypeStruct((B, N, hw_pad), jnp.float32),
        grid_spec=pltpu.PrefetchScalarGridSpec(
            num_scalar_prefetch=0,
            grid=grid,
            in_specs=[
                pl.BlockSpec((None, Cin, t_hw), lambda b, j: (b, 0, j)),
                pl.BlockSpec((N, Cin), lambda b, j: (0, 0)),  # constant -> VMEM-resident
            ],
            out_specs=pl.BlockSpec((None, N, t_hw), lambda b, j: (b, 0, j)),
        ),
        compiler_params=pltpu.CompilerParams(
            dimension_semantics=("parallel", "parallel")),
    )(x_flat, w_in)

    if hw_pad != HW:
        cams_flat = cams_flat[:, :, :HW]
    cams = cams_flat.reshape(B, N, H, W)  # free reshape, already [B, N, H, W]

    # logits = linear(global_avg_pool(feature_rect)); since linear has no bias
    # (is_contrastive) it commutes with the spatial mean, i.e. it equals the
    # spatial mean of the un-normalized CAMs = mean(cams) * W*W.
    logits = jnp.mean(cams, axis=(2, 3)) * float(W * W)
    return logits, cams


def reference_forward(x_nchw, conv3_w, linear_w):
    """Pure-JAX reference mirroring the PyTorch semantics (f32)."""
    B, Cin, H, W = x_nchw.shape
    Cout = conv3_w.shape[0]
    x32 = x_nchw.astype(jnp.float32)
    feat = jnp.einsum('bchw,oc->bohw', x32, conv3_w.reshape(Cout, Cin))  # 1x1 conv
    pooled = jnp.mean(feat, axis=(2, 3))                                 # [B, Cout]
    logits = pooled @ linear_w.T                                         # [B, N]
    cams = jnp.einsum('nc,bchw->bnhw', linear_w, feat) / float(W) ** 2
    return logits, cams


if __name__ == "__main__":
    # small but module-consistent shapes:
    #   conv3 of ResNet-50 layer4 bottleneck: 512 -> 2048 (1x1)
    #   linear: 2048 -> N_CLASSES (chosen 16 here)
    B, Cin, Cout, H, W, N_CLASSES = 2, 512, 2048, 8, 8, 16

    key = jax.random.PRNGKey(0)
    kx, kc, kl = jax.random.split(key, 3)
    x = jax.random.normal(kx, (B, Cin, H, W), dtype=jnp.float32)
    conv3_w = jax.random.normal(kc, (Cout, Cin, 1, 1), dtype=jnp.float32) * (1.0 / Cin) ** 0.5
    linear_w = jax.random.normal(kl, (N_CLASSES, Cout), dtype=jnp.float32) * (1.0 / Cout) ** 0.5

    fwd = jax.jit(model_forward, static_argnames=('t_hw_target',))
    ref_logits, ref_cams = reference_forward(x, conv3_w, linear_w)

    # ---- f32 path: tight tolerance (only the weight-fold accumulation order differs) ----
    w_fused_f32 = fuse_head_weights(conv3_w, linear_w, dtype=jnp.float32)
    logits, cams = fwd(x, w_fused_f32)
    jax.block_until_ready((logits, cams))
    assert logits.shape == (B, N_CLASSES)
    assert cams.shape == (B, N_CLASSES, H, W)
    assert jnp.allclose(logits, ref_logits, atol=2e-3, rtol=2e-3)
    assert jnp.allclose(cams, ref_cams, atol=2e-3, rtol=2e-3)

    # ---- bf16 streaming path (recommended production config: halves X HBM traffic) ----
    w_fused_bf16 = fuse_head_weights(conv3_w, linear_w, dtype=jnp.bfloat16)
    logits_bf, cams_bf = fwd(x.astype(jnp.bfloat16), w_fused_bf16)
    jax.block_until_ready((logits_bf, cams_bf))
    assert jnp.allclose(logits_bf, ref_logits, atol=1.5e-2, rtol=5e-2)
    assert jnp.allclose(cams_bf, ref_cams, atol=3e-3, rtol=5e-2)

    print("KERNEL_OK")
</pallas_src>

<mosaic_0001>
module attributes {stable_mosaic.version = 11 : i64} {
  func.func @head_kernel(%arg0: i32, %arg1: i32, %arg2: memref<1x512x64xf32, #tpu.memory_space<vmem>>, %arg3: memref<16x512xf32, #tpu.memory_space<vmem>>, %arg4: memref<1x16x64xf32, #tpu.memory_space<vmem>>) attributes {dimension_semantics = [#tpu.dimension_semantics<parallel>, #tpu.dimension_semantics<parallel>], iteration_bounds = array<i64: 2, 1>, scalar_prefetch = 0 : i64, scratch_operands = 0 : i64, tpu.core_type = #tpu.core_type<tc>, window_params = [{transform_indices = @transform_0, window_bounds = array<i64: 1, 512, 64>}, {pipeline_mode = #tpu.pipeline_mode<synchronous>, transform_indices = @transform_1, window_bounds = array<i64: 16, 512>}, {transform_indices = @transform_2, window_bounds = array<i64: 1, 16, 64>}]} {
    %c0 = arith.constant 0 : index
    %c0_0 = arith.constant 0 : index
    %0 = vector.load %arg3[%c0, %c0_0] : memref<16x512xf32, #tpu.memory_space<vmem>>, vector<16x512xf32>
    %c0_1 = arith.constant 0 : index
    %c0_2 = arith.constant 0 : index
    %c0_3 = arith.constant 0 : index
    %1 = vector.load %arg2[%c0_1, %c0_2, %c0_3] : memref<1x512x64xf32, #tpu.memory_space<vmem>>, vector<1x512x64xf32>
    %2 = vector.shape_cast %1 : vector<1x512x64xf32> to vector<512x64xf32>
    %cst = arith.constant dense<0.000000e+00> : vector<16x64xf32>
    %3 = tpu.matmul %0, %2, %cst {dimension_numbers = #tpu.dot_dimension_numbers<[1], [0], [0], [1], [0, 0, 1, 1], [], []>} : vector<16x512xf32>, vector<512x64xf32>, vector<16x64xf32> -> vector<16x64xf32>
    %cst_4 = arith.constant 1.562500e-02 : f32
    %4 = vector.broadcast %cst_4 : f32 to vector<16x64xf32>
    %5 = arith.mulf %3, %4 : vector<16x64xf32>
    %c0_5 = arith.constant 0 : index
    %c0_6 = arith.constant 0 : index
    %c0_7 = arith.constant 0 : index
    %6 = vector.load %arg4[%c0_5, %c0_6, %c0_7] : memref<1x16x64xf32, #tpu.memory_space<vmem>>, vector<1x16x64xf32>
    %7 = vector.shape_cast %6 : vector<1x16x64xf32> to vector<16x64xf32>
    %8 = vector.shape_cast %5 : vector<16x64xf32> to vector<1x16x64xf32>
    tpu.vector_store %arg4[%c0_5, %c0_6, %c0_7], %8 {strides = array<i32>} : memref<1x16x64xf32, #tpu.memory_space<vmem>>, vector<1x16x64xf32>,
    return
  }
  func.func @transform_0(%arg0: i32, %arg1: i32) -> (i32, i32, i32) {
    %c0_i32 = arith.constant 0 : i32
    %c0_i32_0 = arith.constant 0 : i32
    return %arg0, %c0_i32, %arg1 : i32, i32, i32
  }
  func.func @transform_1(%arg0: i32, %arg1: i32) -> (i32, i32) {
    %c0_i32 = arith.constant 0 : i32
    %c0_i32_0 = arith.constant 0 : i32
    %c0_i32_1 = arith.constant 0 : i32
    return %c0_i32, %c0_i32_0 : i32, i32
  }
  func.func @transform_2(%arg0: i32, %arg1: i32) -> (i32, i32, i32) {
    %c0_i32 = arith.constant 0 : i32
    %c0_i32_0 = arith.constant 0 : i32
    return %arg0, %c0_i32, %arg1 : i32, i32, i32
  }
}

</mosaic_0001>

<llo_original>
// kernel: model_forward.1
$region0: #{model_forward.1}
  #allocation0 [shape = 'u32[]', space=smem, size = 0x4, offset = 0x4, fixed_abs, tag = 'smem constant byte address 0x4 - core index']
  #allocation1 [shape = 'u32[72,128]{1,0:T(1,128)}', space=vmem, size = 0x9000, scoped, tag = 'internal scratch']
  %s0 = inlined_call_operand.vmem [shape: f32[2,512,64], index: 0, kind: input, shape index: {}]
  %s1 = inlined_call_operand.vmem [shape: f32[16,512], index: 1, kind: input, shape index: {}]
  %s2 = inlined_call_operand.vmem [shape: f32[2,16,64], index: 2, kind: output, shape index: {}]
  %s3 = sld [smem:[#allocation0]]
  $region41: #{model_forward.1} parent=0
    _
  %s5 = ssub.s32 1, %s3
  %s6 = scalar_select 0, %s5, %s3
  loop: start=0, step=1, limit=4
  $region2: #{model_forward.1} parent=0 // loop_pre_header
    _
  $region3: #{model_forward.1} parent=0 // loop_header
    %s8 = sphi 0, %s12
    %p9 = scmp.ge.s32.totalorder %s8, 4
    %s15 = sphi 0, %s27
    %s16 = sphi 0, %s23
    %s17 = sphi 0, %s15
    %s18 = sphi 0, %s16
    %s19 = sphi 0, %s17
    %s20 = sphi 0, %s18
    %s32 = sphi 0, %s34
    %s35 = sphi 0, %s32
    %s36 = sphi 0, %s35
    %s52 = sphi 0, %s36
    %s56 = sphi 0, %s56
    %s58 = sphi 0, %s56
    %s59 = sphi 0, %s58
    %s73 = sphi 0, %s59
    %s81 = sphi 0, %s83
    %s84 = sphi 0, %s81
    %s85 = sphi 0, %s84
    %s101 = sphi 0, %s85
  $region4: #{model_forward.1} parent=0 // loop_header_branch
    %11 = sbr.rel (%p9) target = $region8
  $region5: #{model_forward.1} parent=0 // loop_body
    %s13 = ssub.s32 %s8, 1
    %s14 = ssub.s32 %s8, 2
    %s21 = sadd.s32 1, %s16
    %p22 = scmp.ge.s32.totalorder %s21, 1
    %s23 = scalar_select %p22, 0, %s21
    %s24 = sadd.s32 1, %s15
    %s25 = scalar_select %p22, %s24, %s15
    %p26 = scmp.ge.s32.totalorder %s25, 2
    %s27 = scalar_select %p26, 0, %s25
    %s28 = ssub.s32 %s15, %s27
    %s29 = ssub.s32 %s16, %s23
    %s30 = sor.u32 %s28, %s29
    %p31 = scmp.eq.s32.totalorder %s30, 0
    %s33 = sadd.s32 %s32, 1
    %s34 = scalar_select %p31, %s32, %s33
    %p37 = pneg %p31
    %p38 = scmp.eq.s32.totalorder %s8, 1
    %p39 = por %p37, %p38
    %p40 = scmp.ne.s32.totalorder %s32, %s35
    %p41 = scmp.eq.s32.totalorder %s8, 0
    %p42 = por %p40, %p41
    %p43 = scmp.ne.s32.totalorder %s32, %s35
    %p44 = scmp.eq.s32.totalorder %s13, 1
    %p45 = por %p43, %p44
    %p46 = scmp.ne.s32.totalorder %s35, %s36
    %p47 = scmp.eq.s32.totalorder %s13, 0
    %p48 = por %p46, %p47
    %p49 = scmp.ne.s32.totalorder %s35, %s36
    %p50 = scmp.eq.s32.totalorder %s14, 1
    %p51 = por %p49, %p50
    %p53 = scmp.ne.s32.totalorder %s36, %s52
    %p54 = scmp.eq.s32.totalorder %s14, 0
    %p55 = por %p53, %p54
    %s57 = sadd.s32 %s56, 1
    %p60 = scmp.eq.s32.totalorder %s8, 1
    %p61 = scmp.ne.s32.totalorder %s56, %s58
    %p62 = scmp.eq.s32.totalorder %s8, 0
    %p63 = por %p61, %p62
    %p64 = scmp.ne.s32.totalorder %s56, %s58
    %p65 = scmp.eq.s32.totalorder %s13, 1
    %p66 = por %p64, %p65
    %p67 = scmp.ne.s32.totalorder %s58, %s59
    %p68 = scmp.eq.s32.totalorder %s13, 0
    %p69 = por %p67, %p68
    %p70 = scmp.ne.s32.totalorder %s58, %s59
    %p71 = scmp.eq.s32.totalorder %s14, 1
    %p72 = por %p70, %p71
    %p74 = scmp.ne.s32.totalorder %s59, %s73
    %p75 = scmp.eq.s32.totalorder %s14, 0
    %p76 = por %p74, %p75
    %s77 = ssub.s32 %s15, %s27
    %s78 = ssub.s32 %s16, %s23
    %s79 = sor.u32 %s77, %s78
    %p80 = scmp.eq.s32.totalorder %s79, 0
    %s82 = sadd.s32 %s81, 1
    %s83 = scalar_select %p80, %s81, %s82
    %p86 = pneg %p80
    %p87 = scmp.eq.s32.totalorder %s8, 1
    %p88 = por %p86, %p87
    %p89 = scmp.ne.s32.totalorder %s81, %s84
    %p90 = scmp.eq.s32.totalorder %s8, 0
    %p91 = por %p89, %p90
    %p92 = scmp.ne.s32.totalorder %s81, %s84
    %p93 = scmp.eq.s32.totalorder %s13, 1
    %p94 = por %p92, %p93
    %p95 = scmp.ne.s32.totalorder %s84, %s85
    %p96 = scmp.eq.s32.totalorder %s13, 0
    %p97 = por %p95, %p96
    %p98 = scmp.ne.s32.totalorder %s84, %s85
    %p99 = scmp.eq.s32.totalorder %s14, 1
    %p100 = por %p98, %p99
    %p102 = scmp.ne.s32.totalorder %s85, %s101
    %p103 = scmp.eq.s32.totalorder %s14, 0
    %p104 = por %p102, %p103
    %p105 = scmp.le.s32.totalorder 1, %s8
    %p106 = scmp.lt.s32.totalorder %s8, 3
    %p107 = pnand %p105, %p106
    %p108 = pneg %p107
    // Predicated region
    $region9: #{model_forward.1} parent=5 // pred_check
      _
    $region10: #{model_forward.1} parent=5 // pred_check_branch
      %110 = sbr.rel (%p107) target = $region12
    $region11: #{model_forward.1} parent=5 // pred_region
      %s111 = ssub.s32 %s8, 1
      // Predicated region
      $region13: #{model_forward.1} parent=11 // pred_check
        %p112 = pneg %p69
      $region14: #{model_forward.1} parent=11 // pred_check_branch
        %114 = sbr.rel (%p112) target = $region16
      $region15: #{model_forward.1} parent=11 // pred_region
        _
      $region16: #{model_forward.1} parent=11 // pred_fallthru
        _
    $region12: #{model_forward.1} parent=5 // pred_fallthru
      _
    %p115 = scmp.lt.s32.totalorder %s8, 2
    // Predicated region
    $region17: #{model_forward.1} parent=5 // pred_check
      %p116 = pneg %p115
    $region18: #{model_forward.1} parent=5 // pred_check_branch
      %118 = sbr.rel (%p116) target = $region20
    $region19: #{model_forward.1} parent=5 // pred_region
      // Predicated region
      $region21: #{model_forward.1} parent=19 // pred_check
        %p119 = pneg %p42
      $region22: #{model_forward.1} parent=19 // pred_check_branch
        %121 = sbr.rel (%p119) target = $region24
      $region23: #{model_forward.1} parent=19 // pred_region
        %p122 = scmp.lt.s32.totalorder %s15, 1
        %s123 = scalar_select %p122, %s15, 1
        %p124 = scmp.lt.s32.totalorder %s16, 0
        %s125 = scalar_select %p124, %s16, 0
        %s126 = smul.addr %s123, 64
        %s127 = sadd.s32 %s125, %s126
        %s128 = smul.addr %s127, 8
        %s129 = scalar_lea.vmem %s0, %s128
      $region24: #{model_forward.1} parent=19 // pred_fallthru
        _
    $region20: #{model_forward.1} parent=5 // pred_fallthru
      _
    %p130 = scmp.le.s32.totalorder 1, %s8
    %p131 = scmp.lt.s32.totalorder %s8, 3
    %p132 = pnand %p130, %p131
    %p133 = pneg %p132
    // Predicated region
    $region25: #{model_forward.1} parent=5 // pred_check
      _
    $region26: #{model_forward.1} parent=5 // pred_check_branch
      %135 = sbr.rel (%p132) target = $region28
    $region27: #{model_forward.1} parent=5 // pred_region
      %s136 = ssub.s32 %s8, 1
      %p137 = scmp.lt.s32.totalorder %s17, 1
      %s138 = scalar_select %p137, %s17, 1
      %p139 = scmp.lt.s32.totalorder %s18, 0
      %s140 = scalar_select %p139, %s18, 0
      %s141 = smul.addr %s138, 64
      %s142 = sadd.s32 %s140, %s141
      %s143 = smul.addr %s142, 8
      %s144 = scalar_lea.vmem %s0, %s143
      %p145 = pneg %p48
      %p146 = pneg %p45
      %p147 = pneg %p69
      %p148 = pneg %p66
      %p149 = pneg %p97
      %p150 = pneg %p94
      %p151 = scmp.lt.s32.totalorder %s17, 1
      %s152 = scalar_select %p151, %s17, 1
      %p153 = scmp.lt.s32.totalorder %s18, 0
      %s154 = scalar_select %p153, %s18, 0
      %s155 = smul.addr %s152, 2
      %s156 = sadd.s32 %s154, %s155
      %s157 = smul.addr %s156, 8
      %s158 = scalar_lea.vmem %s2, %s157
      %p159 = scmp.lt.s32.totalorder %s17, 1
      %s160 = scalar_select %p159, %s17, 1
      %p161 = scmp.lt.s32.totalorder %s18, 0
      %s162 = scalar_select %p161, %s18, 0
      %s163 = smul.addr %s160, 64
      %s164 = sadd.s32 %s162, %s163
      %s165 = smul.addr %s164, 8
      %s166 = scalar_lea.vmem %s0, %s165
      %p167 = scmp.lt.s32.totalorder %s17, 1
      %s168 = scalar_select %p167, %s17, 1
      %p169 = scmp.lt.s32.totalorder %s18, 0
      %s170 = scalar_select %p169, %s18, 0
      %s171 = smul.addr %s168, 2
      %s172 = sadd.s32 %s170, %s171
      %s173 = smul.addr %s172, 8
      %s174 = scalar_lea.vmem %s2, %s173
      %v175 = vld [vmem:[%s1] sm:$0xff]
      %v176 = vld [vmem:[%s1 + $0x8] sm:$0xff]
      %v177 = vld [vmem:[%s1 + $0x10] sm:$0xff]
      %v178 = vld [vmem:[%s1 + $0x18] sm:$0xff]
      %v179 = vld [vmem:[%s1 + $0x20] sm:$0xff]
      %v180 = vld [vmem:[%s1 + $0x28] sm:$0xff]
      %v181 = vld [vmem:[%s1 + $0x30] sm:$0xff]
      %v182 = vld [vmem:[%s1 + $0x38] sm:$0xff]
      %v183 = vld [vmem:[%s166] sm:$0xff]
      %v184 = vld [vmem:[%s166 + $0x8] sm:$0xff]
      %v185 = vld [vmem:[%s166 + $0x10] sm:$0xff]
      %v186 = vld [vmem:[%s166 + $0x18] sm:$0xff]
      %v187 = vld [vmem:[%s166 + $0x20] sm:$0xff]
      %v188 = vld [vmem:[%s166 + $0x28] sm:$0xff]
      %v189 = vld [vmem:[%s166 + $0x30] sm:$0xff]
      %v190 = vld [vmem:[%s166 + $0x38] sm:$0xff]
      %v191 = vld [vmem:[%s166 + $0x40] sm:$0xff]
      %v192 = vld [vmem:[%s166 + $0x48] sm:$0xff]
      %v193 = vld [vmem:[%s166 + $0x50] sm:$0xff]
      %v194 = vld [vmem:[%s166 + $0x58] sm:$0xff]
      %v195 = vld [vmem:[%s166 + $0x60] sm:$0xff]
      %v196 = vld [vmem:[%s166 + $0x68] sm:$0xff]
      %v197 = vld [vmem:[%s166 + $0x70] sm:$0xff]
      %v198 = vld [vmem:[%s166 + $0x78] sm:$0xff]
      %v199 = vld [vmem:[%s166 + $0x80] sm:$0xff]
      %v200 = vld [vmem:[%s166 + $0x88] sm:$0xff]
      %v201 = vld [vmem:[%s166 + $0x90] sm:$0xff]
      %v202 = vld [vmem:[%s166 + $0x98] sm:$0xff]
      %v203 = vld [vmem:[%s166 + $0xa0] sm:$0xff]
      %v204 = vld [vmem:[%s166 + $0xa8] sm:$0xff]
      %v205 = vld [vmem:[%s166 + $0xb0] sm:$0xff]
      %v206 = vld [vmem:[%s166 + $0xb8] sm:$0xff]
      %v207 = vld [vmem:[%s166 + $0xc0] sm:$0xff]
      %v208 = vld [vmem:[%s166 + $0xc8] sm:$0xff]
      %v209 = vld [vmem:[%s166 + $0xd0] sm:$0xff]
      %v210 = vld [vmem:[%s166 + $0xd8] sm:$0xff]
      %v211 = vld [vmem:[%s166 + $0xe0] sm:$0xff]
      %v212 = vld [vmem:[%s166 + $0xe8] sm:$0xff]
      %v213 = vld [vmem:[%s166 + $0xf0] sm:$0xff]
      %v214 = vld [vmem:[%s166 + $0xf8] sm:$0xff]
      %v215 = vld [vmem:[%s166 + $0x100] sm:$0xff]
      %v216 = vld [vmem:[%s166 + $0x108] sm:$0xff]
      %v217 = vld [vmem:[%s166 + $0x110] sm:$0xff]
      %v218 = vld [vmem:[%s166 + $0x118] sm:$0xff]
      %v219 = vld [vmem:[%s166 + $0x120] sm:$0xff]
      %v220 = vld [vmem:[%s166 + $0x128] sm:$0xff]
      %v221 = vld [vmem:[%s166 + $0x130] sm:$0xff]
      %v222 = vld [vmem:[%s166 + $0x138] sm:$0xff]
      %v223 = vld [vmem:[%s166 + $0x140] sm:$0xff]
      %v224 = vld [vmem:[%s166 + $0x148] sm:$0xff]
      %v225 = vld [vmem:[%s166 + $0x150] sm:$0xff]
      %v226 = vld [vmem:[%s166 + $0x158] sm:$0xff]
      %v227 = vld [vmem:[%s166 + $0x160] sm:$0xff]
      %v228 = vld [vmem:[%s166 + $0x168] sm:$0xff]
      %v229 = vld [vmem:[%s166 + $0x170] sm:$0xff]
      %v230 = vld [vmem:[%s166 + $0x178] sm:$0xff]
      %v231 = vld [vmem:[%s166 + $0x180] sm:$0xff]
      %v232 = vld [vmem:[%s166 + $0x188] sm:$0xff]
      %v233 = vld [vmem:[%s166 + $0x190] sm:$0xff]
      %v234 = vld [vmem:[%s166 + $0x198] sm:$0xff]
      %v235 = vld [vmem:[%s166 + $0x1a0] sm:$0xff]
      %v236 = vld [vmem:[%s166 + $0x1a8] sm:$0xff]
      %v237 = vld [vmem:[%s166 + $0x1b0] sm:$0xff]
      %v238 = vld [vmem:[%s166 + $0x1b8] sm:$0xff]
      %v239 = vld [vmem:[%s166 + $0x1c0] sm:$0xff]
      %v240 = vld [vmem:[%s166 + $0x1c8] sm:$0xff]
      %v241 = vld [vmem:[%s166 + $0x1d0] sm:$0xff]
      %v242 = vld [vmem:[%s166 + $0x1d8] sm:$0xff]
      %v243 = vld [vmem:[%s166 + $0x1e0] sm:$0xff]
      %v244 = vld [vmem:[%s166 + $0x1e8] sm:$0xff]
      %v245 = vld [vmem:[%s166 + $0x1f0] sm:$0xff]
      %v246 = vld [vmem:[%s166 + $0x1f8] sm:$0xff]
      %247 = vmatpush.msra.mxu0 %v198
      %248 = vmatpush.msra.mxu0 %v197
      %249 = vmatpush.msra.mxu0 %v196
      %250 = vmatpush.msra.mxu0 %v195
      %251 = vmatpush.msra.mxu0 %v194
      %252 = vmatpush.msra.mxu0 %v193
      %253 = vmatpush.msra.mxu0 %v192
      %254 = vmatpush.msra.mxu0 %v191
      %255 = vmatpush.msra.mxu0 %v190
      %256 = vmatpush.msra.mxu0 %v189
      %257 = vmatpush.msra.mxu0 %v188
      %258 = vmatpush.msra.mxu0 %v187
      %259 = vmatpush.msra.mxu0 %v186
      %260 = vmatpush.msra.mxu0 %v185
      %261 = vmatpush.msra.mxu0 %v184
      %262 = vmatpush.msra.mxu0 %v183
      %263 = vmatmul.f32.gmra.mxu0 %v175
      %v264 = vpop.f32.mrf.mxu0
      %v265 = vadd.f32 0.0, %v264
      %266 = vmatmul.f32.gmra.mxu0 %v179
      %v267 = vpop.f32.mrf.mxu0
      %v268 = vadd.f32 0.0, %v267
      %269 = vdwg.mxu0
      %270 = vmatpush.msra.mxu0 %v214
      %271 = vmatpush.msra.mxu0 %v213
      %272 = vmatpush.msra.mxu0 %v212
      %273 = vmatpush.msra.mxu0 %v211
      %274 = vmatpush.msra.mxu0 %v210
      %275 = vmatpush.msra.mxu0 %v209
      %276 = vmatpush.msra.mxu0 %v208
      %277 = vmatpush.msra.mxu0 %v207
      %278 = vmatpush.msra.mxu0 %v206
      %279 = vmatpush.msra.mxu0 %v205
      %280 = vmatpush.msra.mxu0 %v204
      %281 = vmatpush.msra.mxu0 %v203
      %282 = vmatpush.msra.mxu0 %v202
      %283 = vmatpush.msra.mxu0 %v201
      %284 = vmatpush.msra.mxu0 %v200
      %285 = vmatpush.msra.mxu0 %v199
      %286 = vmatmul.f32.gmra.mxu0 %v176
      %v287 = vpop.f32.mrf.mxu0
      %v288 = vadd.f32 %v265, %v287
      %289 = vmatmul.f32.gmra.mxu0 %v180
      %v290 = vpop.f32.mrf.mxu0
      %v291 = vadd.f32 %v268, %v290
      %292 = vdwg.mxu0
      %293 = vmatpush.msra.mxu0 %v230
      %294 = vmatpush.msra.mxu0 %v229
      %295 = vmatpush.msra.mxu0 %v228
      %296 = vmatpush.msra.mxu0 %v227
      %297 = vmatpush.msra.mxu0 %v226
      %298 = vmatpush.msra.mxu0 %v225
      %299 = vmatpush.msra.mxu0 %v224
      %300 = vmatpush.msra.mxu0 %v223
      %301 = vmatpush.msra.mxu0 %v222
      %302 = vmatpush.msra.mxu0 %v221
      %303 = vmatpush.msra.mxu0 %v220
      %304 = vmatpush.msra.mxu0 %v219
      %305 = vmatpush.msra.mxu0 %v218
      %306 = vmatpush.msra.mxu0 %v217
      %307 = vmatpush.msra.mxu0 %v216
      %308 = vmatpush.msra.mxu0 %v215
      %309 = vmatmul.f32.gmra.mxu0 %v177
      %v310 = vpop.f32.mrf.mxu0
      %v311 = vadd.f32 %v288, %v310
      %312 = vmatmul.f32.gmra.mxu0 %v181
      %v313 = vpop.f32.mrf.mxu0
      %v314 = vadd.f32 %v291, %v313
      %315 = vdwg.mxu0
      %316 = vmatpush.msra.mxu0 %v246
      %317 = vmatpush.msra.mxu0 %v245
      %318 = vmatpush.msra.mxu0 %v244
      %319 = vmatpush.msra.mxu0 %v243
      %320 = vmatpush.msra.mxu0 %v242
      %321 = vmatpush.msra.mxu0 %v241
      %322 = vmatpush.msra.mxu0 %v240
      %323 = vmatpush.msra.mxu0 %v239
      %324 = vmatpush.msra.mxu0 %v238
      %325 = vmatpush.msra.mxu0 %v237
      %326 = vmatpush.msra.mxu0 %v236
      %327 = vmatpush.msra.mxu0 %v235
      %328 = vmatpush.msra.mxu0 %v234
      %329 = vmatpush.msra.mxu0 %v233
      %330 = vmatpush.msra.mxu0 %v232
      %331 = vmatpush.msra.mxu0 %v231
      %332 = vmatmul.f32.gmra.mxu0 %v178
      %v333 = vpop.f32.mrf.mxu0
      %v334 = vadd.f32 %v311, %v333
      %335 = vmatmul.f32.gmra.mxu0 %v182
      %v336 = vpop.f32.mrf.mxu0
      %v337 = vadd.f32 %v314, %v336
      %338 = vdwg.mxu0
      %v339 = vmul.f32 %v334, 0.015625
      %v340 = vmul.f32 %v337, 0.015625
      %vm341 = vcmask 523264
      %342 = vst.msk [vmem:[%s174] sm:$0xff] %vm341, %v339
      %343 = vst.msk [vmem:[%s174 + $0x8] sm:$0xff] %vm341, %v340
      %p344 = scmp.lt.s32.totalorder %s17, 1
      %s345 = scalar_select %p344, %s17, 1
      %p346 = scmp.lt.s32.totalorder %s18, 0
      %s347 = scalar_select %p346, %s18, 0
      %s348 = smul.addr %s345, 2
      %s349 = sadd.s32 %s347, %s348
      %s350 = smul.addr %s349, 8
      %s351 = scalar_lea.vmem %s2, %s350
      // Predicated region
      $region29: #{model_forward.1} parent=27 // pred_check
        %p352 = pneg %p94
      $region30: #{model_forward.1} parent=27 // pred_check_branch
        %354 = sbr.rel (%p352) target = $region32
      $region31: #{model_forward.1} parent=27 // pred_region
        _
      $region32: #{model_forward.1} parent=27 // pred_fallthru
        _
    $region28: #{model_forward.1} parent=5 // pred_fallthru
      _
    %p355 = scmp.le.s32.totalorder 2, %s8
    // Predicated region
    $region33: #{model_forward.1} parent=5 // pred_check
      %p356 = pneg %p355
    $region34: #{model_forward.1} parent=5 // pred_check_branch
      %358 = sbr.rel (%p356) target = $region36
    $region35: #{model_forward.1} parent=5 // pred_region
      %s359 = ssub.s32 %s8, 2
      // Predicated region
      $region37: #{model_forward.1} parent=35 // pred_check
        %p360 = pneg %p100
      $region38: #{model_forward.1} parent=35 // pred_check_branch
        %362 = sbr.rel (%p360) target = $region40
      $region39: #{model_forward.1} parent=35 // pred_region
        %p363 = scmp.lt.s32.totalorder %s19, 1
        %s364 = scalar_select %p363, %s19, 1
        %p365 = scmp.lt.s32.totalorder %s20, 0
        %s366 = scalar_select %p365, %s20, 0
        %s367 = smul.addr %s364, 2
        %s368 = sadd.s32 %s366, %s367
        %s369 = smul.addr %s368, 8
        %s370 = scalar_lea.vmem %s2, %s369
      $region40: #{model_forward.1} parent=35 // pred_fallthru
        _
    $region36: #{model_forward.1} parent=5 // pred_fallthru
      _
  $region6: #{model_forward.1} parent=0 // loop_footer
    %s12 = sadd.s32 1, %s8
  $region7: #{model_forward.1} parent=0 // loop_footer_branch
    %7 = sbr.rel target = $region3
  $region8: #{model_forward.1} parent=0 // loop_exit
    _

</llo_original>
